<compile_context>
chip_gen: v7x
topology: tpu7x:2x2x1
jax: 0.10.0
libtpu: 0.0.40
codegen_flags: <defaults>
</compile_context>

<pallas_src>
import jax
import jax.numpy as jnp
from jax.experimental import pallas as pl
from jax.experimental.pallas import tpu as pltpu

_LANE = 128


def _ceil_div(a: int, b: int) -> int:
    return -(-a // b)


def _round_up(a: int, m: int) -> int:
    return _ceil_div(a, m) * m


def _scale3d_kernel(x_ref, s_ref, o_ref):
    # x_ref / o_ref: (Rb, Lb) tile of the flattened (N*C, T*H*W) array.
    # s_ref:         (Rb, 1)  per-row (= per (n, c)) scale, broadcast over lanes.
    o_ref[...] = (x_ref[...] * s_ref[...]).astype(o_ref.dtype)


def _device_tuning():
    """Per-generation (target in+out block bytes, scoped VMEM limit)."""
    kind = ""
    try:
        kind = jax.devices()[0].device_kind.lower()
    except Exception:
        pass
    if "v7" in kind:
        # 64 MiB physical VMEM per TC: ~6 MiB in + ~6 MiB out blocks,
        # double-buffered = ~24 MiB; leave headroom under the 64 MiB ceiling.
        return 12 << 20, 44 << 20
    if "v6" in kind:
        # 128 MiB physical VMEM: ~8 MiB in + ~8 MiB out blocks.
        return 16 << 20, 56 << 20
    if "v5" in kind:
        # 128 MiB physical VMEM, but scoped default is only 16 MiB, so the
        # explicit limit is mandatory once blocks grow.
        return 16 << 20, 48 << 20
    # Unknown chip / interpret mode: conservative.
    return 8 << 20, 32 << 20


def _choose_block(rows, lanes, in_itemsize, out_itemsize, target_io_bytes):
    """Pick (row_block, lane_block, sublane) so one grid step's combined
    input+output block traffic is ~target_io_bytes, obeying (sublane, 128)."""
    sub = max(8, 32 // max(1, in_itemsize))   # 8 f32, 16 bf16, 32 int8/fp8
    per_elem = in_itemsize + out_itemsize     # HBM bytes moved per element
    padded_rows = _round_up(rows, sub)

    # Lane block: whole rows if one sublane-group of full rows fits the budget,
    # otherwise the largest multiple of 128 lanes that fits.
    if lanes * per_elem * sub <= target_io_bytes:
        lane_blk = lanes
    else:
        lane_blk = max(_LANE, (target_io_bytes // (sub * per_elem)) // _LANE * _LANE)

    # Row block: multiple of `sub`, sized so in+out block bytes ~= target.
    want_rows = max(sub, target_io_bytes // max(1, lane_blk * per_elem))
    want_rows = min(want_rows, padded_rows)
    row_blk = max(sub, (want_rows // sub) * sub)
    return row_blk, lane_blk, sub


def _ensure_shardable_grid(rows, lanes, row_blk, lane_blk, sub):
    """Guarantee >=2 grid steps (ideally an even count) along the parallel
    axes so v7x's two TensorCores both get work.  Harmless on 1-TC chips."""
    gr, gl = _ceil_div(rows, row_blk), _ceil_div(lanes, lane_blk)

    if gr * gl < 2:
        # Whole array currently fits in one block: split the bigger axis in 2.
        padded_rows = _round_up(rows, sub)
        if padded_rows >= 2 * sub:
            row_blk = _round_up(_ceil_div(padded_rows, 2), sub)
        elif lanes >= 2 * _LANE:
            lane_blk = max(_LANE, _round_up(_ceil_div(lanes, 2), _LANE))
        return row_blk, lane_blk

    # Prefer an even total step count for balanced megacore sharding.
    if (gr * gl) % 2 == 1:
        if gr > 1:
            cand = _round_up(_ceil_div(rows, gr + 1), sub)
            if cand >= sub and _ceil_div(rows, cand) % 2 == 0:
                row_blk = cand
        elif gl > 1 and lane_blk > _LANE:
            cand = max(_LANE, _round_up(_ceil_div(lanes, gl + 1), _LANE))
            if _ceil_div(lanes, cand) % 2 == 0:
                lane_blk = cand
    return row_blk, lane_blk


def scale3d_forward(
    x: jax.Array,
    scale: jax.Array,
    *,
    cast_scale_to_input_dtype: bool = False,
) -> jax.Array:
    """x: (N, C, T, H, W); scale: (1, C, 1, 1, 1). Returns x * scale.

    cast_scale_to_input_dtype=True keeps the output in x.dtype (e.g. bf16 in
    -> bf16 out), halving HBM writeback on this bandwidth-bound op; the
    default matches PyTorch type promotion (bf16 * f32 -> f32).
    """
    N, C, T, H, W = x.shape
    assert scale.shape == (1, C, 1, 1, 1)

    if cast_scale_to_input_dtype:
        out_dtype = x.dtype
    else:
        out_dtype = jnp.result_type(x.dtype, scale.dtype)

    R = N * C
    L = T * H * W

    # Lane-dense flattening (free for the default row-major contiguous layout).
    x2 = x.reshape(R, L)
    # One scale value per row (= per (n, c) pair).
    s_rows = (
        jnp.broadcast_to(scale.reshape(1, C), (N, C))
        .reshape(R, 1)
        .astype(out_dtype)
    )

    target_io_bytes, vmem_limit = _device_tuning()
    in_isz = jnp.dtype(x.dtype).itemsize
    out_isz = jnp.dtype(out_dtype).itemsize
    Rb, Lb, sub = _choose_block(R, L, in_isz, out_isz, target_io_bytes)
    Rb, Lb = _ensure_shardable_grid(R, L, Rb, Lb, sub)
    grid = (pl.cdiv(R, Rb), pl.cdiv(L, Lb))

    # Note: if profiles still show DMA gaps at step boundaries (most likely on
    # v7x), pipeline_mode=pl.Buffered(3) on the x BlockSpec is a cheaper
    # alternative to further block growth.
    out2 = pl.pallas_call(
        _scale3d_kernel,
        out_shape=jax.ShapeDtypeStruct((R, L), out_dtype),
        grid_spec=pltpu.PrefetchScalarGridSpec(
            num_scalar_prefetch=0,
            grid=grid,
            in_specs=[
                pl.BlockSpec((Rb, Lb), lambda r, l: (r, l)),   # x block
                pl.BlockSpec((Rb, 1), lambda r, l: (r, 0)),    # per-row scale
            ],
            out_specs=pl.BlockSpec((Rb, Lb), lambda r, l: (r, l)),
        ),
        compiler_params=pltpu.CompilerParams(
            dimension_semantics=("parallel", "parallel"),
            vmem_limit_bytes=vmem_limit,
        ),
    )(x2, s_rows)

    return out2.reshape(N, C, T, H, W)


class Scale3DLayer:
    """JAX/Pallas port of the PyTorch Scale3DLayer."""

    def __init__(self, num_channels: int, initial: int = 1):
        # torch.empty((1, C, 1, 1, 1)).fill_(initial) -> deterministic fill.
        self.scale = jnp.full(
            (1, num_channels, 1, 1, 1), float(initial), dtype=jnp.float32
        )

    def __call__(self, x: jax.Array, **kwargs) -> jax.Array:
        return scale3d_forward(x, self.scale, **kwargs)


if __name__ == "__main__":
    key = jax.random.PRNGKey(0)
    N, C, T, H, W = 2, 4, 8, 16, 16
    x = jax.random.normal(key, (N, C, T, H, W), dtype=jnp.float32)

    layer = Scale3DLayer(num_channels=C, initial=2)  # initial=2 so scaling is visible
    out = layer(x)
    out = jax.block_until_ready(out)

    # Reference check against plain-JAX broadcasting semantics.
    ref = x * layer.scale
    assert out.shape == (N, C, T, H, W)
    assert out.dtype == ref.dtype
    assert jnp.allclose(out, ref, atol=1e-6, rtol=1e-6)

    # Also exercise the mixed-dtype path (bf16 input, f32 scale -> f32 out).
    x_bf16 = x.astype(jnp.bfloat16)
    out_mixed = jax.block_until_ready(layer(x_bf16))
    ref_mixed = x_bf16.astype(jnp.float32) * layer.scale
    assert out_mixed.dtype == jnp.float32
    assert jnp.allclose(out_mixed, ref_mixed, atol=1e-2, rtol=1e-2)

    # Opt-in bf16-output fast path (halved writeback; deviates from promotion).
    out_fast = jax.block_until_ready(layer(x_bf16, cast_scale_to_input_dtype=True))
    assert out_fast.dtype == jnp.bfloat16
    assert jnp.allclose(out_fast.astype(jnp.float32), ref_mixed, atol=3e-2, rtol=3e-2)

    print("KERNEL_OK")
</pallas_src>

<mosaic_0001>
module attributes {stable_mosaic.version = 11 : i64} {
  func.func @_scale3d_kernel(%arg0: i32, %arg1: i32, %arg2: memref<8x1024xf32, #tpu.memory_space<vmem>>, %arg3: memref<8x1xf32, #tpu.memory_space<vmem>>, %arg4: memref<8x1024xf32, #tpu.memory_space<vmem>>) attributes {dimension_semantics = [#tpu.dimension_semantics<parallel>, #tpu.dimension_semantics<parallel>], iteration_bounds = array<i64: 1, 2>, scalar_prefetch = 0 : i64, scratch_operands = 0 : i64, tpu.core_type = #tpu.core_type<tc>, window_params = [{transform_indices = @transform_0, window_bounds = array<i64: 8, 1024>}, {transform_indices = @transform_1, window_bounds = array<i64: 8, 1>}, {transform_indices = @transform_2, window_bounds = array<i64: 8, 1024>}]} {
    %c0 = arith.constant 0 : index
    %c0_0 = arith.constant 0 : index
    %0 = vector.load %arg2[%c0, %c0_0] : memref<8x1024xf32, #tpu.memory_space<vmem>>, vector<8x1024xf32>
    %c0_1 = arith.constant 0 : index
    %c0_2 = arith.constant 0 : index
    %1 = vector.load %arg3[%c0_1, %c0_2] : memref<8x1xf32, #tpu.memory_space<vmem>>, vector<8x1xf32>
    %2 = vector.broadcast %1 : vector<8x1xf32> to vector<8x1024xf32>
    %3 = arith.mulf %0, %2 : vector<8x1024xf32>
    %c0_3 = arith.constant 0 : index
    %c0_4 = arith.constant 0 : index
    %4 = vector.load %arg4[%c0_3, %c0_4] : memref<8x1024xf32, #tpu.memory_space<vmem>>, vector<8x1024xf32>
    tpu.vector_store %arg4[%c0_3, %c0_4], %3 {strides = array<i32>} : memref<8x1024xf32, #tpu.memory_space<vmem>>, vector<8x1024xf32>,
    return
  }
  func.func @transform_0(%arg0: i32, %arg1: i32) -> (i32, i32) {
    %c0_i32 = arith.constant 0 : i32
    return %arg0, %arg1 : i32, i32
  }
  func.func @transform_1(%arg0: i32, %arg1: i32) -> (i32, i32) {
    %c0_i32 = arith.constant 0 : i32
    %c0_i32_0 = arith.constant 0 : i32
    return %arg0, %c0_i32 : i32, i32
  }
  func.func @transform_2(%arg0: i32, %arg1: i32) -> (i32, i32) {
    %c0_i32 = arith.constant 0 : i32
    return %arg0, %arg1 : i32, i32
  }
}

</mosaic_0001>

<llo_original>
// kernel: tpu_custom_call.1
$region0: #{tpu_custom_call.1}
  #allocation0 [shape = 'u32[]', space=smem, size = 0x4, offset = 0x4, fixed_abs, tag = 'smem constant byte address 0x4 - core index']
  #allocation1 [shape = 'u32[144,128]{1,0:T(1,128)}', space=vmem, size = 0x12000, scoped, tag = 'internal scratch']
  %s0 = inlined_call_operand.hbm [shape: f32[8,2048], index: 0, kind: input, shape index: {}]
  %s1 = inlined_call_operand.vmem [shape: f32[8,1], index: 1, kind: input, shape index: {}]
  %s2 = inlined_call_operand.hbm [shape: f32[8,2048], index: 2, kind: output, shape index: {}]
  %s3 = sld [smem:[#allocation0]]
  $region45: #{tpu_custom_call.1} parent=0
    _
  %s5 = ssub.s32 1, %s3
  %s6 = scalar_select 0, %s5, %s3
  $region1: #{tpu_custom_call.1} parent=0
    #allocation2 [shape = 'u8[65536]{0}', space=vmem, size = 0x10000, scoped, tag = 'input window, operand 0']
    #allocation3 [shape = 's32[2]{0}', space=sflag, size = 0x8, scoped, tag = 'scoped memory for tpu_custom_call.1']
    #allocation4 [shape = 's32[2]{0}', space=sflag, size = 0x8, scoped, tag = 'scoped memory for tpu_custom_call.1']
    #allocation5 [shape = 'u8[65536]{0}', space=vmem, size = 0x10000, scoped, tag = 'output window, operand 0']
    %7 = vsyncpa [#allocation3], 0
    %s8 = scalar_lea.sflag [#allocation3], 1
    %9 = vsyncpa %s8, 0
    %10 = vsyncpa [#allocation4], 0
    %s11 = scalar_lea.sflag [#allocation4], 1
    %12 = vsyncpa %s11, 0
    loop: start=0, step=1, limit=4
    $region2: #{tpu_custom_call.1} parent=1 // loop_pre_header
      _
    $region3: #{tpu_custom_call.1} parent=1 // loop_header
      %s14 = sphi 0, %s18
      %p15 = scmp.ge.s32.totalorder %s14, 4
      %s21 = sphi 0, %s33
      %s22 = sphi 0, %s29
      %s23 = sphi 0, %s21
      %s24 = sphi 0, %s22
      %s25 = sphi 0, %s23
      %s26 = sphi 0, %s24
      %s38 = sphi 0, %s40
      %s41 = sphi 0, %s38
      %s42 = sphi 0, %s41
      %s58 = sphi 0, %s42
      %s64 = sphi 0, %s66
      %s67 = sphi 0, %s64
      %s68 = sphi 0, %s67
      %s84 = sphi 0, %s68
      %s92 = sphi 0, %s94
      %s95 = sphi 0, %s92
      %s96 = sphi 0, %s95
      %s112 = sphi 0, %s96
    $region4: #{tpu_custom_call.1} parent=1 // loop_header_branch
      %17 = sbr.rel (%p15) target = $region8
    $region5: #{tpu_custom_call.1} parent=1 // loop_body
      %s19 = ssub.s32 %s14, 1
      %s20 = ssub.s32 %s14, 2
      %s27 = sadd.s32 1, %s22
      %p28 = scmp.ge.s32.totalorder %s27, 2
      %s29 = scalar_select %p28, 0, %s27
      %s30 = sadd.s32 1, %s21
      %s31 = scalar_select %p28, %s30, %s21
      %p32 = scmp.ge.s32.totalorder %s31, 1
      %s33 = scalar_select %p32, 0, %s31
      %s34 = ssub.s32 %s21, %s33
      %s35 = ssub.s32 %s22, %s29
      %s36 = sor.u32 %s34, %s35
      %p37 = scmp.eq.s32.totalorder %s36, 0
      %s39 = sadd.s32 %s38, 1
      %s40 = scalar_select %p37, %s38, %s39
      %p43 = pneg %p37
      %p44 = scmp.eq.s32.totalorder %s14, 1
      %p45 = por %p43, %p44
      %p46 = scmp.ne.s32.totalorder %s38, %s41
      %p47 = scmp.eq.s32.totalorder %s14, 0
      %p48 = por %p46, %p47
      %p49 = scmp.ne.s32.totalorder %s38, %s41
      %p50 = scmp.eq.s32.totalorder %s19, 1
      %p51 = por %p49, %p50
      %p52 = scmp.ne.s32.totalorder %s41, %s42
      %p53 = scmp.eq.s32.totalorder %s19, 0
      %p54 = por %p52, %p53
      %p55 = scmp.ne.s32.totalorder %s41, %s42
      %p56 = scmp.eq.s32.totalorder %s20, 1
      %p57 = por %p55, %p56
      %p59 = scmp.ne.s32.totalorder %s42, %s58
      %p60 = scmp.eq.s32.totalorder %s20, 0
      %p61 = por %p59, %p60
      %s62 = ssub.s32 %s21, %s33
      %p63 = scmp.eq.s32.totalorder %s62, 0
      %s65 = sadd.s32 %s64, 1
      %s66 = scalar_select %p63, %s64, %s65
      %p69 = pneg %p63
      %p70 = scmp.eq.s32.totalorder %s14, 1
      %p71 = por %p69, %p70
      %p72 = scmp.ne.s32.totalorder %s64, %s67
      %p73 = scmp.eq.s32.totalorder %s14, 0
      %p74 = por %p72, %p73
      %p75 = scmp.ne.s32.totalorder %s64, %s67
      %p76 = scmp.eq.s32.totalorder %s19, 1
      %p77 = por %p75, %p76
      %p78 = scmp.ne.s32.totalorder %s67, %s68
      %p79 = scmp.eq.s32.totalorder %s19, 0
      %p80 = por %p78, %p79
      %p81 = scmp.ne.s32.totalorder %s67, %s68
      %p82 = scmp.eq.s32.totalorder %s20, 1
      %p83 = por %p81, %p82
      %p85 = scmp.ne.s32.totalorder %s68, %s84
      %p86 = scmp.eq.s32.totalorder %s20, 0
      %p87 = por %p85, %p86
      %s88 = ssub.s32 %s21, %s33
      %s89 = ssub.s32 %s22, %s29
      %s90 = sor.u32 %s88, %s89
      %p91 = scmp.eq.s32.totalorder %s90, 0
      %s93 = sadd.s32 %s92, 1
      %s94 = scalar_select %p91, %s92, %s93
      %p97 = pneg %p91
      %p98 = scmp.eq.s32.totalorder %s14, 1
      %p99 = por %p97, %p98
      %p100 = scmp.ne.s32.totalorder %s92, %s95
      %p101 = scmp.eq.s32.totalorder %s14, 0
      %p102 = por %p100, %p101
      %p103 = scmp.ne.s32.totalorder %s92, %s95
      %p104 = scmp.eq.s32.totalorder %s19, 1
      %p105 = por %p103, %p104
      %p106 = scmp.ne.s32.totalorder %s95, %s96
      %p107 = scmp.eq.s32.totalorder %s19, 0
      %p108 = por %p106, %p107
      %p109 = scmp.ne.s32.totalorder %s95, %s96
      %p110 = scmp.eq.s32.totalorder %s20, 1
      %p111 = por %p109, %p110
      %p113 = scmp.ne.s32.totalorder %s96, %s112
      %p114 = scmp.eq.s32.totalorder %s20, 0
      %p115 = por %p113, %p114
      %p116 = scmp.le.s32.totalorder 1, %s14
      %p117 = scmp.lt.s32.totalorder %s14, 3
      %p118 = pnand %p116, %p117
      %p119 = pneg %p118
      // Predicated region
      $region9: #{tpu_custom_call.1} parent=5 // pred_check
        _
      $region10: #{tpu_custom_call.1} parent=5 // pred_check_branch
        %121 = sbr.rel (%p118) target = $region12
      $region11: #{tpu_custom_call.1} parent=5 // pred_region
        %s122 = ssub.s32 %s14, 1
        // Predicated region
        $region13: #{tpu_custom_call.1} parent=11 // pred_check
          %p123 = pneg %p80
        $region14: #{tpu_custom_call.1} parent=11 // pred_check_branch
          %125 = sbr.rel (%p123) target = $region16
        $region15: #{tpu_custom_call.1} parent=11 // pred_region
          %p126 = scmp.lt.s32.totalorder %s23, 0
          %s127 = scalar_select %p126, %s23, 0
          %s128 = smul.addr %s127, 8
          %s129 = scalar_lea.vmem %s1, %s128
        $region16: #{tpu_custom_call.1} parent=11 // pred_fallthru
          _
      $region12: #{tpu_custom_call.1} parent=5 // pred_fallthru
        _
      %p130 = scmp.lt.s32.totalorder %s14, 2
      // Predicated region
      $region17: #{tpu_custom_call.1} parent=5 // pred_check
        %p131 = pneg %p130
      $region18: #{tpu_custom_call.1} parent=5 // pred_check_branch
        %133 = sbr.rel (%p131) target = $region20
      $region19: #{tpu_custom_call.1} parent=5 // pred_region
        // Predicated region
        $region21: #{tpu_custom_call.1} parent=19 // pred_check
          %p134 = pneg %p48
        $region22: #{tpu_custom_call.1} parent=19 // pred_check_branch
          %136 = sbr.rel (%p134) target = $region24
        $region23: #{tpu_custom_call.1} parent=19 // pred_region
          %s137 = sand.u32 %s38, 1
          %s138 = scalar_lea.sflag [#allocation3], %s137
          %s139 = sand.u32 %s38, 1
          %s140 = smul.addr %s139, 64
          %s141 = scalar_lea.vmem [#allocation2], %s140
          %s142 = smul.u32 8, %s22
          %s144 = ssub.s32 1024, 1024
          %145 = vsyncadd %s138, %s144
          %s146 = smul.addr %s21, 16
          %s147 = sadd.s32 %s142, %s146
          %s148 = smul.addr %s147, 128
          %s149 = scalar_lea.hbm %s0, %s148
          %s151 = sshll.u32 %s141, 4
          %s152 = int_to_ptr.vmem [resolvable:$true] %s151
          %154 = dma.hbm_to_vmem [thread:$0]  %s149, 1024, %s152, %s138
        $region24: #{tpu_custom_call.1} parent=19 // pred_fallthru
          _
      $region20: #{tpu_custom_call.1} parent=5 // pred_fallthru
        _
      %p155 = scmp.le.s32.totalorder 1, %s14
      %p156 = scmp.lt.s32.totalorder %s14, 3
      %p157 = pnand %p155, %p156
      %p158 = pneg %p157
      // Predicated region
      $region25: #{tpu_custom_call.1} parent=5 // pred_check
        _
      $region26: #{tpu_custom_call.1} parent=5 // pred_check_branch
        %160 = sbr.rel (%p157) target = $region28
      $region27: #{tpu_custom_call.1} parent=5 // pred_region
        %s161 = ssub.s32 %s14, 1
        %s162 = sand.u32 %s41, 1
        %s163 = scalar_lea.sflag [#allocation3], %s162
        %s164 = sand.u32 %s41, 1
        %s165 = smul.addr %s164, 64
        %s166 = scalar_lea.vmem [#allocation2], %s165
        // Predicated region
        $region29: #{tpu_custom_call.1} parent=27 // pred_check
          %p167 = pneg %p54
        $region30: #{tpu_custom_call.1} parent=27 // pred_check_branch
          %169 = sbr.rel (%p167) target = $region32
        $region31: #{tpu_custom_call.1} parent=27 // pred_region
          %170 = dma.done %s163, 1024
        $region32: #{tpu_custom_call.1} parent=27 // pred_fallthru
          _
        %s171 = sand.u32 %s41, 1
        %s172 = scalar_lea.sflag [#allocation3], %s171
        %s173 = sand.u32 %s41, 1
        %s174 = smul.addr %s173, 64
        %s175 = scalar_lea.vmem [#allocation2], %s174
        %p176 = pneg %p54
        %p177 = pneg %p51
        %p178 = scmp.lt.s32.totalorder %s23, 0
        %s179 = scalar_select %p178, %s23, 0
        %s180 = smul.addr %s179, 8
        %s181 = scalar_lea.vmem %s1, %s180
        %p182 = pneg %p80
        %p183 = pneg %p77
        %p184 = pneg %p108
        %p185 = pneg %p105
        %s186 = sand.u32 %s95, 1
        %s187 = scalar_lea.sflag [#allocation4], %s186
        %s188 = sand.u32 %s95, 1
        %s189 = smul.addr %s188, 64
        %s190 = scalar_lea.vmem [#allocation5], %s189
        %s191 = smul.u32 8, %s24
        %p192 = scmp.lt.s32.totalorder %s23, 0
        %s193 = scalar_select %p192, %s23, 0
        %s194 = smul.addr %s193, 8
        %s195 = scalar_lea.vmem %s1, %s194
        %s196 = smul.u32 8, %s24
        %v197 = vld [vmem:[%s166] sm:$0xff]
        %v198 = vld [vmem:[%s166 + $0x8] sm:$0xff]
        %v199 = vld [vmem:[%s166 + $0x10] sm:$0xff]
        %v200 = vld [vmem:[%s166 + $0x18] sm:$0xff]
        %v201 = vld [vmem:[%s166 + $0x20] sm:$0xff]
        %v202 = vld [vmem:[%s166 + $0x28] sm:$0xff]
        %v203 = vld [vmem:[%s166 + $0x30] sm:$0xff]
        %v204 = vld [vmem:[%s166 + $0x38] sm:$0xff]
        %v205 = vld [vmem:[%s195] sm:$0xff]
        %207 = vset.pattern.permute.xlu0 0
        %208 = vperm.xlu0 %207, %v205
        %v209 = vpop.permute.xlu0 %208
        %v211 = vmul.f32 %v197, %v209
        %v212 = vmul.f32 %v198, %v209
        %v213 = vmul.f32 %v199, %v209
        %v214 = vmul.f32 %v200, %v209
        %v215 = vmul.f32 %v201, %v209
        %v216 = vmul.f32 %v202, %v209
        %v217 = vmul.f32 %v203, %v209
        %v218 = vmul.f32 %v204, %v209
        %219 = vst [vmem:[%s190] sm:$0xff] %v211
        %220 = vst [vmem:[%s190 + $0x8] sm:$0xff] %v212
        %221 = vst [vmem:[%s190 + $0x10] sm:$0xff] %v213
        %222 = vst [vmem:[%s190 + $0x18] sm:$0xff] %v214
        %223 = vst [vmem:[%s190 + $0x20] sm:$0xff] %v215
        %224 = vst [vmem:[%s190 + $0x28] sm:$0xff] %v216
        %225 = vst [vmem:[%s190 + $0x30] sm:$0xff] %v217
        %226 = vst [vmem:[%s190 + $0x38] sm:$0xff] %v218
        %s227 = sand.u32 %s95, 1
        %s228 = scalar_lea.sflag [#allocation4], %s227
        %s229 = sand.u32 %s95, 1
        %s230 = smul.addr %s229, 64
        %s231 = scalar_lea.vmem [#allocation5], %s230
        // Predicated region
        $region33: #{tpu_custom_call.1} parent=27 // pred_check
          %p232 = pneg %p105
        $region34: #{tpu_custom_call.1} parent=27 // pred_check_branch
          %234 = sbr.rel (%p232) target = $region36
        $region35: #{tpu_custom_call.1} parent=27 // pred_region
          %s235 = smul.u32 8, %s24
          %s237 = ssub.s32 1024, 1024
          %238 = vsyncadd %s228, %s237
          %s239 = smul.addr %s23, 16
          %s240 = sadd.s32 %s235, %s239
          %s241 = smul.addr %s240, 128
          %s242 = scalar_lea.hbm %s2, %s241
          %s244 = sshll.u32 %s231, 4
          %s245 = int_to_ptr.vmem [resolvable:$true] %s244
          %247 = dma.vmem_to_hbm [thread:$0]  %s245, 1024, %s242, %s228
        $region36: #{tpu_custom_call.1} parent=27 // pred_fallthru
          _
      $region28: #{tpu_custom_call.1} parent=5 // pred_fallthru
        _
      %p248 = scmp.le.s32.totalorder 2, %s14
      // Predicated region
      $region37: #{tpu_custom_call.1} parent=5 // pred_check
        %p249 = pneg %p248
      $region38: #{tpu_custom_call.1} parent=5 // pred_check_branch
        %251 = sbr.rel (%p249) target = $region40
      $region39: #{tpu_custom_call.1} parent=5 // pred_region
        %s252 = ssub.s32 %s14, 2
        // Predicated region
        $region41: #{tpu_custom_call.1} parent=39 // pred_check
          %p253 = pneg %p111
        $region42: #{tpu_custom_call.1} parent=39 // pred_check_branch
          %255 = sbr.rel (%p253) target = $region44
        $region43: #{tpu_custom_call.1} parent=39 // pred_region
          %s256 = sand.u32 %s96, 1
          %s257 = scalar_lea.sflag [#allocation4], %s256
          %s258 = sand.u32 %s96, 1
          %s259 = smul.addr %s258, 64
          %s260 = scalar_lea.vmem [#allocation5], %s259
          %261 = dma.done %s257, 1024
        $region44: #{tpu_custom_call.1} parent=39 // pred_fallthru
          _
      $region40: #{tpu_custom_call.1} parent=5 // pred_fallthru
        _
    $region6: #{tpu_custom_call.1} parent=1 // loop_footer
      %s18 = sadd.s32 1, %s14
    $region7: #{tpu_custom_call.1} parent=1 // loop_footer_branch
      %13 = sbr.rel target = $region3
    $region8: #{tpu_custom_call.1} parent=1 // loop_exit
      _
    %262 = vsyncpa [#allocation3], 1
    %s263 = scalar_lea.sflag [#allocation3], 1
    %264 = vsyncpa %s263, 1
    %265 = vsyncpa [#allocation4], 1
    %s266 = scalar_lea.sflag [#allocation4], 1
    %267 = vsyncpa %s266, 1

</llo_original>
